<compile_context>
chip_gen: v7x
topology: tpu7x:2x2x1
jax: 0.10.0
libtpu: 0.0.40
codegen_flags: <defaults>
</compile_context>

<pallas_src>
import functools

import jax
import jax.numpy as jnp
from jax import lax
from jax.experimental import pallas as pl
from jax.experimental.pallas import tpu as pltpu


def _to_i32(v):
    """Two's-complement int32 value of an unsigned 32-bit constant."""
    v &= 0xFFFFFFFF
    return v - 0x100000000 if v >= 0x80000000 else v


# lowbias32 hash constants (Chris Wellons' prospector), as int32 values.
_GOLD = _to_i32(0x9E3779B9)
_MIX1 = _to_i32(0x7FEB352D)
_MIX2 = _to_i32(0x846CA68B)


def _lsr(x, k):
    """Logical right shift of an int32 vector by compile-time constant k."""
    return (x >> k) & jnp.int32((1 << (32 - k)) - 1)


def _dropout_kernel(seed_ref, x_ref, o_ref, *, threshold31, scale):
    """Dropout on one (tile_rows, lane_width) block of the flattened features.

    keep ~ Bernoulli(1 - p); output = x * keep / (1 - p), computed in the
    native feature dtype.
    """
    rows, cols = x_ref.shape
    base = pl.program_id(0) * (rows * cols)

    rid = lax.broadcasted_iota(jnp.int32, (rows, cols), 0)
    cid = lax.broadcasted_iota(jnp.int32, (rows, cols), 1)
    # Global flat element index (mod 2^32) -> mask is independent of tiling.
    idx = base + rid * cols + cid

    # lowbias32 hash of (index, seed).  Bit-exact uint32 math done in int32
    # with wraparound; logical shifts emulated by arithmetic shift + mask.
    h = idx + seed_ref[0] * jnp.int32(_GOLD)
    h = h ^ _lsr(h, 16)
    h = h * jnp.int32(_MIX1)
    h = h ^ _lsr(h, 15)
    h = h * jnp.int32(_MIX2)
    h = h ^ _lsr(h, 16)

    # Top 31 hash bits are uniform in [0, 2^31); integer threshold compare.
    keep = _lsr(h, 1) >= jnp.int32(threshold31)           # P(keep) = 1 - p

    x = x_ref[...]
    o_ref[...] = jnp.where(keep, x * jnp.asarray(scale, dtype=x.dtype),
                           jnp.zeros_like(x))


def dropout(features, *, p=0.5, seed=0, training=True,
            block_rows=512, lane_width=1024):
    """Dropout over sparse-tensor features, matching torch.nn.Dropout.

    Identity in eval mode / p == 0; otherwise zero each element with
    probability p and scale survivors by 1 / (1 - p).  Handles arbitrary
    shapes / point counts by padding a flattened, lane-dense slab.
    """
    if (not training) or p == 0.0:
        return features
    if p >= 1.0:
        return jnp.zeros_like(features)
    assert block_rows % 8 == 0 and lane_width % 128 == 0

    orig_shape = features.shape
    dtype = features.dtype
    total = int(features.size)
    itemsize = jnp.dtype(dtype).itemsize

    # Lane-dense slab: (rows, lane_width), padded at the end (ragged tail OK).
    n_rows = pl.cdiv(total, lane_width)
    tile_rows = min(block_rows, n_rows)       # grid==1 -> block == full dims
    n_rows_pad = pl.cdiv(n_rows, tile_rows) * tile_rows
    padded_total = n_rows_pad * lane_width

    flat = features.reshape(-1)
    if padded_total != total:
        flat = jnp.pad(flat, (0, padded_total - total))
    slab = flat.reshape(n_rows_pad, lane_width)

    threshold31 = min(int(round(float(p) * float(2 ** 31))), 2 ** 31 - 1)
    scale = 1.0 / (1.0 - float(p))
    seed_arr = jnp.asarray([seed], dtype=jnp.int32)

    out_slab = pl.pallas_call(
        functools.partial(_dropout_kernel,
                          threshold31=threshold31, scale=scale),
        out_shape=jax.ShapeDtypeStruct((n_rows_pad, lane_width), dtype),
        grid_spec=pltpu.PrefetchScalarGridSpec(
            num_scalar_prefetch=1,
            grid=(n_rows_pad // tile_rows,),
            in_specs=[pl.BlockSpec((tile_rows, lane_width),
                                   lambda i, s: (i, 0))],
            out_specs=pl.BlockSpec((tile_rows, lane_width),
                                   lambda i, s: (i, 0)),
        ),
        compiler_params=pltpu.CompilerParams(
            # The mask is a stateless hash of the global element index, so
            # blocks are order-independent -> v7x can split across its 2 TCs.
            dimension_semantics=("parallel",),
        ),
        cost_estimate=pl.CostEstimate(
            flops=12 * padded_total,
            transcendentals=0,
            bytes_accessed=2 * padded_total * itemsize,
        ),
    )(seed_arr, slab)

    return out_slab.reshape(-1)[:total].reshape(orig_shape)


if __name__ == "__main__":
    key = jax.random.PRNGKey(0)
    # Synthetic sparse-tensor features: 64 active points, 32 channels.
    feats = jax.random.normal(key, (64, 32), dtype=jnp.float32)
    p = 0.5

    out = dropout(feats, p=p, seed=0, training=True)
    out = jax.block_until_ready(out)
    assert out.shape == feats.shape and out.dtype == feats.dtype

    # Sanity checks on dropout semantics.
    zero_mask = out == 0.0
    nonzero = ~zero_mask
    # Survivors must be exactly input * 1/(1-p).
    assert jnp.allclose(out[nonzero], feats[nonzero] / (1.0 - p),
                        rtol=1e-6, atol=1e-6)
    drop_frac = float(jnp.mean(zero_mask.astype(jnp.float32)))
    assert 0.3 < drop_frac < 0.7, f"unexpected drop fraction {drop_frac}"

    # Ragged / non-tile-aligned shape exercises the wrapper padding path.
    feats2 = jax.random.normal(jax.random.PRNGKey(1), (37, 19),
                               dtype=jnp.float32)
    out2 = jax.block_until_ready(dropout(feats2, p=0.3, seed=7, training=True))
    assert out2.shape == feats2.shape
    nz2 = out2 != 0.0
    assert jnp.allclose(out2[nz2], feats2[nz2] / (1.0 - 0.3),
                        rtol=1e-5, atol=1e-6)

    # Eval mode is identity.
    out_eval = dropout(feats, p=p, training=False)
    assert jnp.array_equal(out_eval, feats)

    print("KERNEL_OK")
</pallas_src>

<mosaic_0001>
module attributes {stable_mosaic.version = 11 : i64} {
  func.func @_dropout_kernel(%arg0: i32, %arg1: memref<1xi32, #tpu.memory_space<smem>>, %arg2: memref<2x1024xf32, #tpu.memory_space<vmem>>, %arg3: memref<2x1024xf32, #tpu.memory_space<vmem>>) attributes {dimension_semantics = [#tpu.dimension_semantics<parallel>], iteration_bounds = array<i64: 1>, scalar_prefetch = 1 : i64, scratch_operands = 0 : i64, tpu.core_type = #tpu.core_type<tc>, window_params = [{transform_indices = @transform_0, window_bounds = array<i64: 2, 1024>}, {transform_indices = @transform_1, window_bounds = array<i64: 2, 1024>}]} {
    %c2048_i32 = arith.constant 2048 : i32
    %0 = arith.muli %arg0, %c2048_i32 : i32
    %1 = tpu.iota {dimensions = array<i32: 0>} : vector<2x1024xi32>
    %2 = tpu.iota {dimensions = array<i32: 1>} : vector<2x1024xi32>
    %c1024_i32 = arith.constant 1024 : i32
    %3 = vector.broadcast %c1024_i32 : i32 to vector<2x1024xi32>
    %4 = arith.muli %1, %3 : vector<2x1024xi32>
    %5 = vector.broadcast %0 : i32 to vector<2x1024xi32>
    %6 = arith.addi %5, %4 : vector<2x1024xi32>
    %7 = arith.addi %6, %2 : vector<2x1024xi32>
    %c0 = arith.constant 0 : index
    %8 = memref.load %arg1[%c0] : memref<1xi32, #tpu.memory_space<smem>>
    %c-1640531527_i32 = arith.constant -1640531527 : i32
    %9 = arith.muli %8, %c-1640531527_i32 : i32
    %10 = vector.broadcast %9 : i32 to vector<2x1024xi32>
    %11 = arith.addi %7, %10 : vector<2x1024xi32>
    %c16_i32 = arith.constant 16 : i32
    %12 = vector.broadcast %c16_i32 : i32 to vector<2x1024xi32>
    %13 = arith.shrsi %11, %12 : vector<2x1024xi32>
    %c65535_i32 = arith.constant 65535 : i32
    %14 = vector.broadcast %c65535_i32 : i32 to vector<2x1024xi32>
    %15 = arith.andi %13, %14 : vector<2x1024xi32>
    %16 = arith.xori %11, %15 : vector<2x1024xi32>
    %c2146121005_i32 = arith.constant 2146121005 : i32
    %17 = vector.broadcast %c2146121005_i32 : i32 to vector<2x1024xi32>
    %18 = arith.muli %16, %17 : vector<2x1024xi32>
    %c15_i32 = arith.constant 15 : i32
    %19 = vector.broadcast %c15_i32 : i32 to vector<2x1024xi32>
    %20 = arith.shrsi %18, %19 : vector<2x1024xi32>
    %c131071_i32 = arith.constant 131071 : i32
    %21 = vector.broadcast %c131071_i32 : i32 to vector<2x1024xi32>
    %22 = arith.andi %20, %21 : vector<2x1024xi32>
    %23 = arith.xori %18, %22 : vector<2x1024xi32>
    %c-2073254261_i32 = arith.constant -2073254261 : i32
    %24 = vector.broadcast %c-2073254261_i32 : i32 to vector<2x1024xi32>
    %25 = arith.muli %23, %24 : vector<2x1024xi32>
    %c16_i32_0 = arith.constant 16 : i32
    %26 = vector.broadcast %c16_i32_0 : i32 to vector<2x1024xi32>
    %27 = arith.shrsi %25, %26 : vector<2x1024xi32>
    %c65535_i32_1 = arith.constant 65535 : i32
    %28 = vector.broadcast %c65535_i32_1 : i32 to vector<2x1024xi32>
    %29 = arith.andi %27, %28 : vector<2x1024xi32>
    %30 = arith.xori %25, %29 : vector<2x1024xi32>
    %c1_i32 = arith.constant 1 : i32
    %31 = vector.broadcast %c1_i32 : i32 to vector<2x1024xi32>
    %32 = arith.shrsi %30, %31 : vector<2x1024xi32>
    %c2147483647_i32 = arith.constant 2147483647 : i32
    %33 = vector.broadcast %c2147483647_i32 : i32 to vector<2x1024xi32>
    %34 = arith.andi %32, %33 : vector<2x1024xi32>
    %c1073741824_i32 = arith.constant 1073741824 : i32
    %35 = vector.broadcast %c1073741824_i32 : i32 to vector<2x1024xi32>
    %36 = arith.cmpi sge, %34, %35 : vector<2x1024xi32>
    %c0_2 = arith.constant 0 : index
    %c0_3 = arith.constant 0 : index
    %37 = vector.load %arg2[%c0_2, %c0_3] : memref<2x1024xf32, #tpu.memory_space<vmem>>, vector<2x1024xf32>
    %cst = arith.constant 2.000000e+00 : f32
    %38 = vector.broadcast %cst : f32 to vector<2x1024xf32>
    %39 = arith.mulf %37, %38 : vector<2x1024xf32>
    %cst_4 = arith.constant 0.000000e+00 : f32
    %40 = vector.broadcast %cst_4 : f32 to vector<2x1024xf32>
    %41 = arith.select %36, %39, %40 : vector<2x1024xi1>, vector<2x1024xf32>
    %c0_5 = arith.constant 0 : index
    %c0_6 = arith.constant 0 : index
    %42 = vector.load %arg3[%c0_5, %c0_6] : memref<2x1024xf32, #tpu.memory_space<vmem>>, vector<2x1024xf32>
    tpu.vector_store %arg3[%c0_5, %c0_6], %41 {strides = array<i32>} : memref<2x1024xf32, #tpu.memory_space<vmem>>, vector<2x1024xf32>,
    return
  }
  func.func @transform_0(%arg0: i32, %arg1: memref<1xi32, #tpu.memory_space<smem>>) -> (i32, i32) {
    %c0_i32 = arith.constant 0 : i32
    %c0_i32_0 = arith.constant 0 : i32
    return %arg0, %c0_i32 : i32, i32
  }
  func.func @transform_1(%arg0: i32, %arg1: memref<1xi32, #tpu.memory_space<smem>>) -> (i32, i32) {
    %c0_i32 = arith.constant 0 : i32
    %c0_i32_0 = arith.constant 0 : i32
    return %arg0, %c0_i32 : i32, i32
  }
}

</mosaic_0001>

<llo_original>
// kernel: tpu_custom_call.1
$region0: #{tpu_custom_call.1}
  #allocation0 [shape = 'u32[]', space=smem, size = 0x4, offset = 0x4, fixed_abs, tag = 'smem constant byte address 0x4 - core index']
  #allocation1 [shape = 'u32[144,128]{1,0:T(1,128)}', space=vmem, size = 0x12000, scoped, tag = 'internal scratch']
  #allocation2 [shape = 's32[1]{0}', space=sflag, size = 0x4, scoped, tag = 'scoped memory for tpu_custom_call.1']
  #allocation3 [shape = 's32[1]{0:T(128)S(6)}', space=smem, size = 0x200, scoped, tag = 'prefetched SMEM operand 0']
  %s0 = inlined_call_operand.<no memory space> [shape: s32[1], index: 0, kind: input, shape index: {}]
  %s1 = inlined_call_operand.hbm [shape: f32[2,1024], index: 1, kind: input, shape index: {}]
  %s2 = inlined_call_operand.hbm [shape: f32[2,1024], index: 2, kind: output, shape index: {}]
  %s3 = sld [smem:[#allocation0]]
  $region18: #{tpu_custom_call.1} parent=0
    _
  %s5 = ssub.s32 1, %s3
  %s6 = scalar_select 0, %s5, %s3
  %7 = sst [smem:[#allocation3]] %s0
  $region1: #{tpu_custom_call.1} parent=0
    #allocation4 [shape = 'u8[8192]{0}', space=vmem, size = 0x2000, scoped, tag = 'input window, operand 1, single buffered']
    #allocation5 [shape = 's32[1]{0}', space=sflag, size = 0x4, scoped, tag = 'scoped memory for tpu_custom_call.1']
    #allocation6 [shape = 's32[1]{0}', space=sflag, size = 0x4, scoped, tag = 'scoped memory for tpu_custom_call.1']
    #allocation7 [shape = 'u8[8192]{0}', space=vmem, size = 0x2000, scoped, tag = 'output window, operand 0, single buffered']
    %8 = vsyncpa [#allocation5], 0
    %9 = vsyncpa [#allocation6], 0
    // Predicated region
    $region2: #{tpu_custom_call.1} parent=1 // pred_check
      _
    $region3: #{tpu_custom_call.1} parent=1 // pred_check_branch
      %11 = sbr.rel (0) target = $region5
    $region4: #{tpu_custom_call.1} parent=1 // pred_region
      %s13 = ssub.s32 256, 256
      %14 = vsyncadd [#allocation5], %s13
      %s16 = sshll.u32 [#allocation4], 4
      %s17 = int_to_ptr.vmem [resolvable:$true] %s16
      %19 = dma.hbm_to_vmem [thread:$0]  %s1, 256, %s17, [#allocation5]
    $region5: #{tpu_custom_call.1} parent=1 // pred_fallthru
      _
    // Predicated region
    $region6: #{tpu_custom_call.1} parent=1 // pred_check
      _
    $region7: #{tpu_custom_call.1} parent=1 // pred_check_branch
      %21 = sbr.rel (0) target = $region9
    $region8: #{tpu_custom_call.1} parent=1 // pred_region
      %22 = dma.done [#allocation5], 256
    $region9: #{tpu_custom_call.1} parent=1 // pred_fallthru
      _
    %s23 = smul.u32 0, 2048
    %v24 = vlaneseq
    %v25 = vshrl.u32 %v24, 7
    %v26 = vlaneseq
    %v27 = vand.u32 %v26, 127
    %v28 = vadd.s32 %v27, 128
    %v29 = vadd.s32 %v27, 256
    %v30 = vadd.s32 %v27, 384
    %v31 = vadd.s32 %v27, 512
    %v32 = vadd.s32 %v27, 640
    %v33 = vadd.s32 %v27, 768
    %v34 = vadd.s32 %v27, 896
    %v35 = vmul.u32 %v25, 1024
    %v36 = vstv %s23
    %v37 = vadd.s32 %v36, %v35
    %v38 = vadd.s32 %v37, %v27
    %v39 = vadd.s32 %v37, %v28
    %v40 = vadd.s32 %v37, %v29
    %v41 = vadd.s32 %v37, %v30
    %v42 = vadd.s32 %v37, %v31
    %v43 = vadd.s32 %v37, %v32
    %v44 = vadd.s32 %v37, %v33
    %v45 = vadd.s32 %v37, %v34
    %s46 = sld [smem:[#allocation3]]
    %s47 = smul.u32 %s46, 2654435769
    %v48 = vstv %s47
    %v49 = vadd.s32 %v38, %v48
    %v50 = vadd.s32 %v39, %v48
    %v51 = vadd.s32 %v40, %v48
    %v52 = vadd.s32 %v41, %v48
    %v53 = vadd.s32 %v42, %v48
    %v54 = vadd.s32 %v43, %v48
    %v55 = vadd.s32 %v44, %v48
    %v56 = vadd.s32 %v45, %v48
    %v57 = vshra.s32 %v49, 16
    %v58 = vshra.s32 %v50, 16
    %v59 = vshra.s32 %v51, 16
    %v60 = vshra.s32 %v52, 16
    %v61 = vshra.s32 %v53, 16
    %v62 = vshra.s32 %v54, 16
    %v63 = vshra.s32 %v55, 16
    %v64 = vshra.s32 %v56, 16
    %v65 = vand.u32 %v57, 65535
    %v66 = vand.u32 %v58, 65535
    %v67 = vand.u32 %v59, 65535
    %v68 = vand.u32 %v60, 65535
    %v69 = vand.u32 %v61, 65535
    %v70 = vand.u32 %v62, 65535
    %v71 = vand.u32 %v63, 65535
    %v72 = vand.u32 %v64, 65535
    %v73 = vxor.u32 %v49, %v65
    %v74 = vxor.u32 %v50, %v66
    %v75 = vxor.u32 %v51, %v67
    %v76 = vxor.u32 %v52, %v68
    %v77 = vxor.u32 %v53, %v69
    %v78 = vxor.u32 %v54, %v70
    %v79 = vxor.u32 %v55, %v71
    %v80 = vxor.u32 %v56, %v72
    %v81 = vmul.u32 %v73, 2146121005
    %v82 = vmul.u32 %v74, 2146121005
    %v83 = vmul.u32 %v75, 2146121005
    %v84 = vmul.u32 %v76, 2146121005
    %v85 = vmul.u32 %v77, 2146121005
    %v86 = vmul.u32 %v78, 2146121005
    %v87 = vmul.u32 %v79, 2146121005
    %v88 = vmul.u32 %v80, 2146121005
    %v89 = vshra.s32 %v81, 15
    %v90 = vshra.s32 %v82, 15
    %v91 = vshra.s32 %v83, 15
    %v92 = vshra.s32 %v84, 15
    %v93 = vshra.s32 %v85, 15
    %v94 = vshra.s32 %v86, 15
    %v95 = vshra.s32 %v87, 15
    %v96 = vshra.s32 %v88, 15
    %v97 = vand.u32 %v89, 131071
    %v98 = vand.u32 %v90, 131071
    %v99 = vand.u32 %v91, 131071
    %v100 = vand.u32 %v92, 131071
    %v101 = vand.u32 %v93, 131071
    %v102 = vand.u32 %v94, 131071
    %v103 = vand.u32 %v95, 131071
    %v104 = vand.u32 %v96, 131071
    %v105 = vxor.u32 %v81, %v97
    %v106 = vxor.u32 %v82, %v98
    %v107 = vxor.u32 %v83, %v99
    %v108 = vxor.u32 %v84, %v100
    %v109 = vxor.u32 %v85, %v101
    %v110 = vxor.u32 %v86, %v102
    %v111 = vxor.u32 %v87, %v103
    %v112 = vxor.u32 %v88, %v104
    %v113 = vmul.u32 %v105, 2221713035
    %v114 = vmul.u32 %v106, 2221713035
    %v115 = vmul.u32 %v107, 2221713035
    %v116 = vmul.u32 %v108, 2221713035
    %v117 = vmul.u32 %v109, 2221713035
    %v118 = vmul.u32 %v110, 2221713035
    %v119 = vmul.u32 %v111, 2221713035
    %v120 = vmul.u32 %v112, 2221713035
    %v121 = vshra.s32 %v113, 16
    %v122 = vshra.s32 %v114, 16
    %v123 = vshra.s32 %v115, 16
    %v124 = vshra.s32 %v116, 16
    %v125 = vshra.s32 %v117, 16
    %v126 = vshra.s32 %v118, 16
    %v127 = vshra.s32 %v119, 16
    %v128 = vshra.s32 %v120, 16
    %v129 = vand.u32 %v121, 65535
    %v130 = vand.u32 %v122, 65535
    %v131 = vand.u32 %v123, 65535
    %v132 = vand.u32 %v124, 65535
    %v133 = vand.u32 %v125, 65535
    %v134 = vand.u32 %v126, 65535
    %v135 = vand.u32 %v127, 65535
    %v136 = vand.u32 %v128, 65535
    %v137 = vxor.u32 %v113, %v129
    %v138 = vxor.u32 %v114, %v130
    %v139 = vxor.u32 %v115, %v131
    %v140 = vxor.u32 %v116, %v132
    %v141 = vxor.u32 %v117, %v133
    %v142 = vxor.u32 %v118, %v134
    %v143 = vxor.u32 %v119, %v135
    %v144 = vxor.u32 %v120, %v136
    %v145 = vshra.s32 %v137, 1
    %v146 = vshra.s32 %v138, 1
    %v147 = vshra.s32 %v139, 1
    %v148 = vshra.s32 %v140, 1
    %v149 = vshra.s32 %v141, 1
    %v150 = vshra.s32 %v142, 1
    %v151 = vshra.s32 %v143, 1
    %v152 = vshra.s32 %v144, 1
    %v153 = vand.u32 %v145, 2147483647
    %v154 = vand.u32 %v146, 2147483647
    %v155 = vand.u32 %v147, 2147483647
    %v156 = vand.u32 %v148, 2147483647
    %v157 = vand.u32 %v149, 2147483647
    %v158 = vand.u32 %v150, 2147483647
    %v159 = vand.u32 %v151, 2147483647
    %v160 = vand.u32 %v152, 2147483647
    %vm161 = vcmp.ge.s32.totalorder %v153, 1073741824
    %vm162 = vcmp.ge.s32.totalorder %v154, 1073741824
    %vm163 = vcmp.ge.s32.totalorder %v155, 1073741824
    %vm164 = vcmp.ge.s32.totalorder %v156, 1073741824
    %vm165 = vcmp.ge.s32.totalorder %v157, 1073741824
    %vm166 = vcmp.ge.s32.totalorder %v158, 1073741824
    %vm167 = vcmp.ge.s32.totalorder %v159, 1073741824
    %vm168 = vcmp.ge.s32.totalorder %v160, 1073741824
    %v169 = vld [vmem:[#allocation4] sm:$0xff]
    %v170 = vld [vmem:[#allocation4 + $0x8] sm:$0xff]
    %v171 = vmul.f32 %v169, 2.0
    %v172 = vmul.f32 %v170, 2.0
    %v175 = vcombine.high %v171, %v171
    %v177 = vunpack.c.l.s4 1983009808
    %v178 = vunpack.c.0.s8 %v177
    %v179 = vlaneseq
    %v180 = vshrl.u32 %v179, 7
    %v181 = vsub.s32 %v178, %v180
    %v182 = vrot.slane %v171, %v181
    %v184 = vunpack.c.l.s4 1983009808
    %v185 = vunpack.c.0.s8 %v184
    %v186 = vlaneseq
    %v187 = vshrl.u32 %v186, 7
    %v188 = vsub.s32 %v185, %v187
    %v189 = vrot.slane %v175, %v188
    %v190 = vcombine.high %v182, %v182
    %v191 = vcombine.high %v189, %v189
    %v192 = vcombine.high %v172, %v172
    %v194 = vunpack.c.l.s4 1983009808
    %v195 = vunpack.c.0.s8 %v194
    %v196 = vlaneseq
    %v197 = vshrl.u32 %v196, 7
    %v198 = vsub.s32 %v195, %v197
    %v199 = vrot.slane %v172, %v198
    %v201 = vunpack.c.l.s4 1983009808
    %v202 = vunpack.c.0.s8 %v201
    %v203 = vlaneseq
    %v204 = vshrl.u32 %v203, 7
    %v205 = vsub.s32 %v202, %v204
    %v206 = vrot.slane %v192, %v205
    %v207 = vcombine.high %v199, %v199
    %v208 = vcombine.high %v206, %v206
    %v217 = vsel %vm161, %v182, 0.0
    %v218 = vsel %vm162, %v190, 0.0
    %v219 = vsel %vm163, %v189, 0.0
    %v220 = vsel %vm164, %v191, 0.0
    %v221 = vsel %vm165, %v199, 0.0
    %v222 = vsel %vm166, %v207, 0.0
    %v223 = vsel %vm167, %v206, 0.0
    %v224 = vsel %vm168, %v208, 0.0
    %v233 = vcombine.low %v217, %v218
    %v234 = vcombine.low %v219, %v220
    %v236 = vunpack.c.l.s4 1983009808
    %v237 = vunpack.c.0.s8 %v236
    %v238 = vlaneseq
    %v239 = vshrl.u32 %v238, 7
    %v240 = vsub.s32 %v237, %v239
    %v241 = vrot.slane %v233, %v240
    %v243 = vunpack.c.l.s4 1983009808
    %v244 = vunpack.c.0.s8 %v243
    %v245 = vlaneseq
    %v246 = vshrl.u32 %v245, 7
    %v247 = vsub.s32 %v244, %v246
    %v248 = vrot.slane %v234, %v247
    %v249 = vcombine.low %v241, %v248
    %v250 = vcombine.low %v221, %v222
    %v251 = vcombine.low %v223, %v224
    %v253 = vunpack.c.l.s4 1983009808
    %v254 = vunpack.c.0.s8 %v253
    %v255 = vlaneseq
    %v256 = vshrl.u32 %v255, 7
    %v257 = vsub.s32 %v254, %v256
    %v258 = vrot.slane %v250, %v257
    %v260 = vunpack.c.l.s4 1983009808
    %v261 = vunpack.c.0.s8 %v260
    %v262 = vlaneseq
    %v263 = vshrl.u32 %v262, 7
    %v264 = vsub.s32 %v261, %v263
    %v265 = vrot.slane %v251, %v264
    %v266 = vcombine.low %v258, %v265
    %269 = vst [vmem:[#allocation7] sm:$0xff] %v249
    %270 = vst [vmem:[#allocation7 + $0x8] sm:$0xff] %v266
    // Predicated region
    $region10: #{tpu_custom_call.1} parent=1 // pred_check
      _
    $region11: #{tpu_custom_call.1} parent=1 // pred_check_branch
      %272 = sbr.rel (0) target = $region13
    $region12: #{tpu_custom_call.1} parent=1 // pred_region
      %s274 = ssub.s32 256, 256
      %275 = vsyncadd [#allocation6], %s274
      %s277 = sshll.u32 [#allocation7], 4
      %s278 = int_to_ptr.vmem [resolvable:$true] %s277
      %280 = dma.vmem_to_hbm [thread:$0]  %s278, 256, %s2, [#allocation6]
    $region13: #{tpu_custom_call.1} parent=1 // pred_fallthru
      _
    // Predicated region
    $region14: #{tpu_custom_call.1} parent=1 // pred_check
      _
    $region15: #{tpu_custom_call.1} parent=1 // pred_check_branch
      %282 = sbr.rel (0) target = $region17
    $region16: #{tpu_custom_call.1} parent=1 // pred_region
      %283 = dma.done [#allocation6], 256
    $region17: #{tpu_custom_call.1} parent=1 // pred_fallthru
      _
    %284 = vsyncpa [#allocation5], 1
    %285 = vsyncpa [#allocation6], 1

</llo_original>
